<compile_context>
chip_gen: v7x
topology: tpu7x:2x2x1
jax: 0.10.0
libtpu: 0.0.40
codegen_flags: <defaults>
</compile_context>

<pallas_src>
import jax
import jax.numpy as jnp
from jax.experimental import pallas as pl
from jax.experimental.pallas import tpu as pltpu


def _ce_loss1_kernel(labels_ref, logits_ref, loss_ref):
    """One batch tile.

    labels_ref: (1, TN) int32 VMEM   -- per-sample class index, batch on lanes
    logits_ref: (C, TN) float32 VMEM -- classes on sublanes, batch on lanes
    loss_ref:   (1, TN) float32 VMEM -- per-sample weighted CE (lane-dense)
    """
    x = logits_ref[...]                                       # (C, TN) f32
    lab = labels_ref[...]                                     # (1, TN) i32
    num_classes = x.shape[0]

    # class index per sublane row (2-D iota; int32 throughout)
    iota = jax.lax.broadcasted_iota(jnp.int32, x.shape, 0)    # (C, TN)

    # numerically stable log-sum-exp over the class (sublane) axis
    m = jnp.max(x, axis=0, keepdims=True)                     # (1, TN)
    lse = m + jnp.log(jnp.sum(jnp.exp(x - m), axis=0, keepdims=True))

    # logit at the target label: one-hot VPU select + sublane sum
    x_lab = jnp.sum(jnp.where(iota == lab, x, 0.0), axis=0, keepdims=True)

    # nn.CrossEntropyLoss on a single sample == lse - x[label]
    ce = lse - x_lab                                          # (1, TN)

    # argmax over classes: first (lowest) index attaining the max, matching
    # torch.argmax tie-breaking.  Kept in int32 (no float cast).
    cand = jnp.where(x == m, iota, num_classes)               # (C, TN) i32
    idx = jnp.min(cand, axis=0, keepdims=True)                # (1, TN) i32

    mult = jnp.where(jnp.logical_and(idx == 1, lab == 1), 1.0,
                     jnp.where(jnp.logical_and(idx == 0, lab == 0),
                               16.0, 24.0))

    loss_ref[...] = (ce * mult).astype(loss_ref.dtype)


def _pick_batch_tile(n, max_tile):
    """Largest lane-aligned tile that divides n exactly (no host-side padding)."""
    if n <= max_tile:
        return n                      # single full-array block (exempt from 8x128 rule)
    t = (max_tile // 128) * 128
    while t >= 128:
        if n % t == 0:
            return t
        t -= 128
    return n                          # fall back: one full block


def cross_entropy_loss1_per_sample(prediction, labels, *, max_tile_n=1024):
    """Batched per-sample losses.

    prediction: (N, C) float logits; labels: (N,) integer class indices.
    Returns (N,) float32 per-sample weighted CE losses.
    """
    prediction = jnp.asarray(prediction)
    n, c = prediction.shape
    labels = jnp.asarray(labels, dtype=jnp.int32).reshape((n,))

    # Layout plumbing only: classes -> sublanes, batch -> lanes.
    logits_t = prediction.astype(jnp.float32).T               # (C, N)
    labels2d = labels.reshape((1, n))                         # (1, N)

    tn = _pick_batch_tile(n, max_tile_n)
    grid = (n // tn,)

    out = pl.pallas_call(
        _ce_loss1_kernel,
        out_shape=jax.ShapeDtypeStruct((1, n), jnp.float32),
        grid=grid,
        in_specs=[
            pl.BlockSpec((1, tn), lambda i: (0, i)),           # labels (lane-aligned)
            pl.BlockSpec((c, tn), lambda i: (0, i)),           # logits (C, TN)
        ],
        out_specs=pl.BlockSpec((1, tn), lambda i: (0, i)),      # lane-dense losses
        compiler_params=pltpu.CompilerParams(
            dimension_semantics=("parallel",)),                 # 2 TCs on v7x
    )(labels2d, logits_t)
    return out[0]


def cross_entropy_loss1(prediction, labels):
    """Faithful module forward: prediction (1, C), labels (1,)/() -> scalar loss."""
    prediction = jnp.asarray(prediction)
    n, _ = prediction.shape
    assert n == 1, "CrossEntropyLoss1 uses .item() -> batch size must be 1"
    return cross_entropy_loss1_per_sample(prediction, labels)[0]


def _reference_per_sample(logits, label):
    """Pure-JAX reference of the PyTorch forward for one sample."""
    logp = jax.nn.log_softmax(logits.astype(jnp.float32))
    ce = -logp[label]
    idx = jnp.argmax(logits)
    mult = jnp.where(jnp.logical_and(idx == 1, label == 1), 1.0,
                     jnp.where(jnp.logical_and(idx == 0, label == 0),
                               16.0, 24.0))
    return ce * mult


if __name__ == "__main__":
    key = jax.random.PRNGKey(0)
    num_classes = 2                       # binary classifier implied by indx in {0,1}
    k1, k2, k3 = jax.random.split(key, 3)

    # 1) Faithful single-sample forward (module semantics: .item() => batch 1).
    pred1 = jax.random.normal(k1, (1, num_classes), dtype=jnp.float32)
    lab1 = jnp.array([1], dtype=jnp.int32)
    loss1 = cross_entropy_loss1(pred1, lab1)
    jax.block_until_ready(loss1)
    ref1 = _reference_per_sample(pred1[0], lab1[0])
    assert jnp.allclose(loss1, ref1, rtol=1e-5, atol=1e-5), (loss1, ref1)

    # 2) Batched per-sample path (perf): 256 samples, 128-wide lane tiles, grid=(2,).
    n = 256
    predn = jax.random.normal(k2, (n, num_classes), dtype=jnp.float32)
    labn = jax.random.randint(k3, (n,), 0, num_classes, dtype=jnp.int32)
    lossn = cross_entropy_loss1_per_sample(predn, labn, max_tile_n=128)
    jax.block_until_ready(lossn)
    refn = jax.vmap(_reference_per_sample)(predn, labn)
    assert jnp.allclose(lossn, refn, rtol=1e-5, atol=1e-5), (lossn, refn)

    print("KERNEL_OK")
</pallas_src>

<mosaic_0001>
module attributes {stable_mosaic.version = 11 : i64} {
  func.func @_ce_loss1_kernel(%arg0: i32, %arg1: memref<1x1xi32, #tpu.memory_space<vmem>>, %arg2: memref<2x1xf32, #tpu.memory_space<vmem>>, %arg3: memref<1x1xf32, #tpu.memory_space<vmem>>) attributes {dimension_semantics = [#tpu.dimension_semantics<parallel>], iteration_bounds = array<i64: 1>, scalar_prefetch = 0 : i64, scratch_operands = 0 : i64, tpu.core_type = #tpu.core_type<tc>, window_params = [{transform_indices = @transform_0, window_bounds = array<i64: 1, 1>}, {transform_indices = @transform_1, window_bounds = array<i64: 2, 1>}, {transform_indices = @transform_2, window_bounds = array<i64: 1, 1>}]} {
    %c0 = arith.constant 0 : index
    %c0_0 = arith.constant 0 : index
    %0 = vector.load %arg2[%c0, %c0_0] : memref<2x1xf32, #tpu.memory_space<vmem>>, vector<2x1xf32>
    %c0_1 = arith.constant 0 : index
    %c0_2 = arith.constant 0 : index
    %1 = vector.load %arg1[%c0_1, %c0_2] : memref<1x1xi32, #tpu.memory_space<vmem>>, vector<1x1xi32>
    %2 = tpu.iota {dimensions = array<i32: 0>} : vector<2x1xi32>
    %cst = arith.constant dense<0xFF800000> : vector<1xf32>
    %3 = vector.multi_reduction <maximumf>, %0, %cst [0] : vector<2x1xf32> to vector<1xf32>
    %4 = vector.shape_cast %3 : vector<1xf32> to vector<1x1xf32>
    %5 = vector.broadcast %4 : vector<1x1xf32> to vector<2x1xf32>
    %6 = arith.subf %0, %5 : vector<2x1xf32>
    %7 = math.exp %6 : vector<2x1xf32>
    %cst_3 = arith.constant dense<0.000000e+00> : vector<1xf32>
    %8 = vector.multi_reduction <add>, %7, %cst_3 [0] : vector<2x1xf32> to vector<1xf32>
    %9 = vector.shape_cast %8 : vector<1xf32> to vector<1x1xf32>
    %10 = math.log %9 : vector<1x1xf32>
    %11 = arith.addf %4, %10 : vector<1x1xf32>
    %12 = vector.broadcast %1 : vector<1x1xi32> to vector<2x1xi32>
    %13 = arith.cmpi eq, %2, %12 : vector<2x1xi32>
    %cst_4 = arith.constant 0.000000e+00 : f32
    %14 = vector.broadcast %cst_4 : f32 to vector<2x1xf32>
    %15 = arith.select %13, %0, %14 : vector<2x1xi1>, vector<2x1xf32>
    %cst_5 = arith.constant dense<0.000000e+00> : vector<1xf32>
    %16 = vector.multi_reduction <add>, %15, %cst_5 [0] : vector<2x1xf32> to vector<1xf32>
    %17 = vector.shape_cast %16 : vector<1xf32> to vector<1x1xf32>
    %18 = arith.subf %11, %17 : vector<1x1xf32>
    %19 = vector.broadcast %4 : vector<1x1xf32> to vector<2x1xf32>
    %20 = arith.cmpf oeq, %0, %19 : vector<2x1xf32>
    %c2_i32 = arith.constant 2 : i32
    %21 = vector.broadcast %c2_i32 : i32 to vector<2x1xi32>
    %22 = arith.select %20, %2, %21 : vector<2x1xi1>, vector<2x1xi32>
    %cst_6 = arith.constant dense<2147483647> : vector<1xi32>
    %23 = vector.multi_reduction <minsi>, %22, %cst_6 [0] : vector<2x1xi32> to vector<1xi32>
    %24 = vector.shape_cast %23 : vector<1xi32> to vector<1x1xi32>
    %c1_i32 = arith.constant 1 : i32
    %25 = vector.broadcast %c1_i32 : i32 to vector<1x1xi32>
    %26 = arith.cmpi eq, %24, %25 : vector<1x1xi32>
    %c1_i32_7 = arith.constant 1 : i32
    %27 = vector.broadcast %c1_i32_7 : i32 to vector<1x1xi32>
    %28 = arith.cmpi eq, %1, %27 : vector<1x1xi32>
    %29 = arith.andi %26, %28 : vector<1x1xi1>
    %c0_i32 = arith.constant 0 : i32
    %30 = vector.broadcast %c0_i32 : i32 to vector<1x1xi32>
    %31 = arith.cmpi eq, %24, %30 : vector<1x1xi32>
    %c0_i32_8 = arith.constant 0 : i32
    %32 = vector.broadcast %c0_i32_8 : i32 to vector<1x1xi32>
    %33 = arith.cmpi eq, %1, %32 : vector<1x1xi32>
    %34 = arith.andi %31, %33 : vector<1x1xi1>
    %cst_9 = arith.constant 1.600000e+01 : f32
    %cst_10 = arith.constant 2.400000e+01 : f32
    %35 = vector.broadcast %cst_9 : f32 to vector<1x1xf32>
    %36 = vector.broadcast %cst_10 : f32 to vector<1x1xf32>
    %37 = arith.select %34, %35, %36 : vector<1x1xi1>, vector<1x1xf32>
    %cst_11 = arith.constant 1.000000e+00 : f32
    %38 = vector.broadcast %cst_11 : f32 to vector<1x1xf32>
    %39 = arith.select %29, %38, %37 : vector<1x1xi1>, vector<1x1xf32>
    %40 = arith.mulf %18, %39 : vector<1x1xf32>
    %c0_12 = arith.constant 0 : index
    %c0_13 = arith.constant 0 : index
    %41 = vector.load %arg3[%c0_12, %c0_13] : memref<1x1xf32, #tpu.memory_space<vmem>>, vector<1x1xf32>
    tpu.vector_store %arg3[%c0_12, %c0_13], %40 {strides = array<i32>} : memref<1x1xf32, #tpu.memory_space<vmem>>, vector<1x1xf32>,
    return
  }
  func.func @transform_0(%arg0: i32) -> (i32, i32) {
    %c0_i32 = arith.constant 0 : i32
    %c0_i32_0 = arith.constant 0 : i32
    return %c0_i32, %arg0 : i32, i32
  }
  func.func @transform_1(%arg0: i32) -> (i32, i32) {
    %c0_i32 = arith.constant 0 : i32
    %c0_i32_0 = arith.constant 0 : i32
    return %c0_i32, %arg0 : i32, i32
  }
  func.func @transform_2(%arg0: i32) -> (i32, i32) {
    %c0_i32 = arith.constant 0 : i32
    %c0_i32_0 = arith.constant 0 : i32
    return %c0_i32, %arg0 : i32, i32
  }
}

</mosaic_0001>

<llo_original>
// kernel: tpu_custom_call.1
$region0: #{tpu_custom_call.1}
  #allocation0 [shape = 'u32[]', space=smem, size = 0x4, offset = 0x4, fixed_abs, tag = 'smem constant byte address 0x4 - core index']
  #allocation1 [shape = 'u32[144,128]{1,0:T(1,128)}', space=vmem, size = 0x12000, scoped, tag = 'internal scratch']
  #allocation2 [shape = 's32[1,1]{1,0:T(1,128)S(1)}', space=vmem, size = 0x200, scoped, tag = 'scoped memory for tpu_custom_call.1']
  %s0 = inlined_call_operand.<no memory space> [shape: s32[1,1], index: 0, kind: input, shape index: {}]
  %s1 = inlined_call_operand.vmem [shape: f32[2,1], index: 1, kind: input, shape index: {}]
  %s2 = inlined_call_operand.hbm [shape: f32[1,1], index: 2, kind: output, shape index: {}]
  %s3 = sld [smem:[#allocation0]]
  $region18: #{tpu_custom_call.1} parent=0
    _
  %s5 = ssub.s32 1, %s3
  %s6 = scalar_select 0, %s5, %s3
  %v7 = vstv %s0
  %8 = vst [vmem:[#allocation2] sm:$0x1] %v7
  $region1: #{tpu_custom_call.1} parent=0
    #allocation3 [shape = 'u8[512]{0}', space=vmem, size = 0x400, scoped, tag = 'output window, operand 0, single buffered']
    #allocation4 [shape = 's32[1]{0}', space=sflag, size = 0x4, scoped, tag = 'scoped memory for tpu_custom_call.1']
    %9 = vsyncpa [#allocation4], 0
    // Predicated region
    $region2: #{tpu_custom_call.1} parent=1 // pred_check
      _
    $region3: #{tpu_custom_call.1} parent=1 // pred_check_branch
      %11 = sbr.rel (0) target = $region5
    $region4: #{tpu_custom_call.1} parent=1 // pred_region
      _
    $region5: #{tpu_custom_call.1} parent=1 // pred_fallthru
      _
    // Predicated region
    $region6: #{tpu_custom_call.1} parent=1 // pred_check
      _
    $region7: #{tpu_custom_call.1} parent=1 // pred_check_branch
      %13 = sbr.rel (0) target = $region9
    $region8: #{tpu_custom_call.1} parent=1 // pred_region
      _
    $region9: #{tpu_custom_call.1} parent=1 // pred_fallthru
      _
    %v14 = vld [vmem:[%s1] sm:$0x3]
    %v15 = vld [vmem:[#allocation2] sm:$0x1]
    %v16 = vlaneseq
    %v17 = vshrl.u32 %v16, 7
    %vm18 = vcmask 1024
    %v19 = vsel %vm18, %v14, -inf
    %v20 = vrot.slane %v19, 4
    %v21 = vmax.f32 %v19, %v20
    %v22 = vrot.slane %v21, 2
    %v23 = vmax.f32 %v21, %v22
    %v24 = vrot.slane %v23, 1
    %v25 = vmax.f32 %v23, %v24
    %v26 = vsub.f32 %v14, %v25
    %v27 = vmul.f32 %v26, 1.442695
    %v28 = vpow.pop %v27
    %v29 = vsel %vm18, %v28, 0.0
    %v30 = vrot.slane %v29, 4
    %v31 = vadd.f32 %v29, %v30
    %v32 = vrot.slane %v31, 2
    %v33 = vadd.f32 %v31, %v32
    %v34 = vrot.slane %v33, 1
    %v35 = vadd.f32 %v33, %v34
    %v36 = vlog2.pop %v35
    %v37 = vmul.f32 %v36, 0.6931472
    %v38 = vadd.f32 %v25, %v37
    %v39 = vlaneseq
    %v40 = vshrl.u32 %v39, 7
    %v41 = vsub.s32 0, %v40
    %v42 = vrot.slane %v15, %v41
    %vm43 = vcmp.eq.s32.totalorder %v17, %v42
    %v44 = vsel %vm43, %v14, 0.0
    %v45 = vsel %vm18, %v44, 0.0
    %v46 = vrot.slane %v45, 4
    %v47 = vadd.f32 %v45, %v46
    %v48 = vrot.slane %v47, 2
    %v49 = vadd.f32 %v47, %v48
    %v50 = vrot.slane %v49, 1
    %v51 = vadd.f32 %v49, %v50
    %v52 = vsub.f32 %v38, %v51
    %vm53 = vcmp.eq.f32.partialorder %v14, %v25
    %v54 = vsel %vm53, %v17, 2
    %v55 = vsel %vm18, %v54, 2147483647
    %v56 = vrot.slane %v55, 4
    %vm57 = vcmp.lt.s32.totalorder %v55, %v56
    %v58 = vsel %vm57, %v55, %v56
    %v59 = vrot.slane %v58, 2
    %vm60 = vcmp.lt.s32.totalorder %v58, %v59
    %v61 = vsel %vm60, %v58, %v59
    %v62 = vrot.slane %v61, 1
    %vm63 = vcmp.lt.s32.totalorder %v61, %v62
    %v64 = vsel %vm63, %v61, %v62
    %vm65 = vcmp.eq.s32.totalorder %v64, 1
    %vm66 = vcmp.eq.s32.totalorder %v15, 1
    %vm67 = vmand %vm65, %vm66
    %vm68 = vcmp.eq.s32.totalorder %v64, 0
    %vm69 = vcmp.eq.s32.totalorder %v15, 0
    %vm70 = vmand %vm68, %vm69
    %v71 = vsel %vm70, 16.0, 24.0
    %v72 = vsel %vm67, 1.0, %v71
    %v73 = vmul.f32 %v52, %v72
    %vm74 = vcmask 0
    %75 = vst.msk [vmem:[#allocation3] sm:$0x1] %vm74, %v73
    // Predicated region
    $region10: #{tpu_custom_call.1} parent=1 // pred_check
      _
    $region11: #{tpu_custom_call.1} parent=1 // pred_check_branch
      %77 = sbr.rel (0) target = $region13
    $region12: #{tpu_custom_call.1} parent=1 // pred_region
      %s79 = ssub.s32 16, 16
      %80 = vsyncadd [#allocation4], %s79
      %s82 = sshll.u32 [#allocation3], 4
      %s83 = int_to_ptr.vmem [resolvable:$true] %s82
      %85 = dma.vmem_to_hbm [thread:$0]  %s83, 16, %s2, [#allocation4]
    $region13: #{tpu_custom_call.1} parent=1 // pred_fallthru
      _
    // Predicated region
    $region14: #{tpu_custom_call.1} parent=1 // pred_check
      _
    $region15: #{tpu_custom_call.1} parent=1 // pred_check_branch
      %87 = sbr.rel (0) target = $region17
    $region16: #{tpu_custom_call.1} parent=1 // pred_region
      %88 = dma.done [#allocation4], 16
    $region17: #{tpu_custom_call.1} parent=1 // pred_fallthru
      _
    %89 = vsyncpa [#allocation4], 1

</llo_original>
